<compile_context>
chip_gen: v5e
topology: v5e:2x2
jax: 0.10.0
libtpu: 0.0.40
codegen_flags: <defaults>
</compile_context>

<pallas_src>
import math
from functools import partial

import jax
import jax.numpy as jnp
import numpy as np
from jax.experimental import pallas as pl
from jax.experimental.pallas import tpu as pltpu

EPS = 1e-6
# stands in for float('-inf') as an ADDITIVE bias: exp() underflows to 0 in f32, so softmax
# matches the reference for every row with at least one unmasked key.
NEG_INF = -1e30   # plain Python float -> literal inside the kernel


# --------------------------- helpers ---------------------------
def _default_vmem_limit():
    """Per-generation VMEM limit: capacity minus headroom (v7x ~48 MiB, v5e/v6e 112 MiB)."""
    try:
        cap = int(pltpu.get_tpu_info().vmem_capacity_bytes)
    except Exception:
        cap = 128 * 1024 * 1024
    return int(min(max(cap - 16 * 1024 * 1024, 32 * 1024 * 1024), 112 * 1024 * 1024))


def _const_spec(shape, index_map):
    """Block whose index never changes: single-buffer it (saves VMEM, matters on v7x)."""
    try:
        return pl.BlockSpec(shape, index_map, pipeline_mode=pl.Buffered(1))
    except Exception:  # older BlockSpec without pipeline_mode -> default double buffering
        return pl.BlockSpec(shape, index_map)


# --------------------------- tiny kernel: shared positional projection ---------------------------
def _pos_proj_kernel(pos_ref, wp_ref, p_out_ref):
    # p = pos_emb @ Wp (bias-free Linear), computed once, emitted bf16, shared across batch/heads
    p_out_ref[...] = jnp.dot(pos_ref[...].astype(jnp.bfloat16), wp_ref[...],
                             preferred_element_type=jnp.float32).astype(jnp.bfloat16)


# --------------------------- fused attention kernel, grid = (batch, head) ---------------------------
def _fused_attn_kernel(x_ref, p_ref, gamma_ref, beta_ref, wqkv_ref, bqkv_ref,
                       uh_ref, vh_ref, maskb_ref, wo_ref, bo_ref,
                       xout_ref, *rest, num_heads, inv_sqrt_dim, return_attn):
    if return_attn:
        attn_ref = rest[0]
        q_s, k_s, v_s = rest[1:]
    else:
        attn_ref = None
        q_s, k_s, v_s = rest

    f32, bf16 = jnp.float32, jnp.bfloat16
    T, D = x_ref.shape[1], x_ref.shape[2]
    H = num_heads
    Dh = D // H
    h = pl.program_id(1)

    # ---- once per batch element: LayerNorm + fused QKV into persistent head-major scratch ----
    @pl.when(h == 0)
    def _():
        x = x_ref[0]                                              # (T, D) f32 residual
        mu = jnp.mean(x, axis=-1, keepdims=True)
        var = jnp.mean((x - mu) ** 2, axis=-1, keepdims=True)
        xn = (x - mu) * jax.lax.rsqrt(var + EPS)
        xn = xn * gamma_ref[...] + beta_ref[...]

        # one (T,D)x(D,3D) bf16 MXU matmul, f32 accumulation
        qkv = jnp.dot(xn.astype(bf16), wqkv_ref[...],
                      preferred_element_type=f32) + bqkv_ref[...]          # (T, 3D)
        q = qkv[:, :D] * inv_sqrt_dim     # fold 1/sqrt(d_model) into q once
        k = qkv[:, D:2 * D]
        v = qkv[:, 2 * D:]

        def heads(t):                     # (T, D) -> (H, T, Dh); one relayout per batch element
            return t.reshape(T, H, Dh).transpose(1, 0, 2).astype(bf16)

        q_s[...] = heads(q)
        k_s[...] = heads(k)
        v_s[...] = heads(v)

        # init the output accumulator: residual + output-projection bias
        xout_ref[0] = x + bo_ref[...]

    # ---- per-head attention (this grid step handles head h only) ----
    q_h = q_s[h]                          # (T, Dh) bf16, already scaled by 1/sqrt(D)
    k_h = k_s[h]
    v_h = v_s[h]
    p_h = p_ref[0]                        # (T, Dh) bf16, head-split once in the wrapper
    qu_h = q_h + uh_ref[0]                # u/v biases pre-scaled per head in the wrapper
    qv_h = q_h + vh_ref[0]

    content = jnp.einsum('td,sd->ts', qu_h, k_h, preferred_element_type=f32)   # (T, T)
    pos_raw = jnp.einsum('td,sd->ts', qv_h, p_h, preferred_element_type=f32)   # (T, T)

    # Transformer-XL relative shift, per head (zero-FLOP re-layout on a (T,T+1) transient)
    padded = jnp.concatenate([jnp.zeros((T, 1), f32), pos_raw], axis=-1)       # (T, T+1)
    pos_shift = padded.reshape(T + 1, T)[1:, :]                                # (T, T)

    # additive key-padding mask bias (0 valid / -1e30 padded) instead of compare+select
    score = content + pos_shift + maskb_ref[0]

    # ---- softmax (f32 statistics, approx reciprocal on the EUP slot) ----
    m = jnp.max(score, axis=-1, keepdims=True)
    e = jnp.exp(score - m)
    denom = jnp.sum(e, axis=-1, keepdims=True)
    attn = (e * pl.reciprocal(denom, approx=True)).astype(bf16)                # (T, T) bf16

    if attn_ref is not None:
        attn_ref[0, 0] = attn

    # ---- per-head context + per-head slice of the output projection, accumulated in f32 ----
    ctx_h = jnp.dot(attn, v_h, preferred_element_type=f32)                     # (T, Dh)
    xout_ref[0] += jnp.dot(ctx_h.astype(bf16), wo_ref[0],
                           preferred_element_type=f32)                         # (T, D)


# --------------------------- wrapper ---------------------------
def attention_block_pallas(x, valid_mask, pos_emb, params, *, return_attn=True):
    f32, bf16 = jnp.float32, jnp.bfloat16
    B, T, D = x.shape
    H = int(params['num_heads'])
    assert D % H == 0
    Dh = D // H
    inv_sqrt_dim = 1.0 / math.sqrt(D)
    x = x.astype(f32)

    # PyTorch Linear stores [out, in]; pre-transpose to [in, out]; fuse Q/K/V on the out axis.
    w_qkv = jnp.concatenate([params['wq'].T, params['wk'].T, params['wv'].T],
                            axis=1).astype(bf16)                              # (D, 3D)
    b_qkv = jnp.concatenate([params['bq'], params['bk'], params['bv']]
                            ).reshape(1, 3 * D).astype(f32)
    wp_t = params['wp'].T.astype(bf16)                                        # (D, D)
    wo_heads = params['wo'].T.reshape(H, Dh, D).astype(bf16)                  # per-head slab of Wo^T
    bo = params['bo'].reshape(1, D).astype(f32)
    u_heads = (params['u_bias'] * inv_sqrt_dim).reshape(H, 1, Dh).astype(bf16)
    v_heads = (params['v_bias'] * inv_sqrt_dim).reshape(H, 1, Dh).astype(bf16)
    gamma = params['ln_gamma'].reshape(1, D).astype(f32)
    beta = params['ln_beta'].reshape(1, D).astype(f32)

    # shared positional projection: computed once, bf16, head-split once (outside the B*H grid)
    p_shared = pl.pallas_call(
        _pos_proj_kernel,
        out_shape=jax.ShapeDtypeStruct((T, D), bf16),
    )(pos_emb.reshape(T, D).astype(f32), wp_t)
    p_heads = p_shared.reshape(T, H, Dh).transpose(1, 0, 2)                   # (H, T, Dh) bf16

    # additive key-padding mask bias: 0 for valid keys, -1e30 for padded keys
    mask_bias = jnp.where(valid_mask, 0.0, NEG_INF).astype(f32).reshape(B, 1, T)

    const2 = lambda b, h: (0, 0)
    in_specs = [
        pl.BlockSpec((1, T, D), lambda b, h: (b, 0, 0)),      # x (per batch element)
        pl.BlockSpec((1, T, Dh), lambda b, h: (h, 0, 0)),     # p (per head)
        _const_spec((1, D), const2),                          # LN gamma
        _const_spec((1, D), const2),                          # LN beta
        _const_spec((D, 3 * D), const2),                      # fused Wqkv (bf16)
        _const_spec((1, 3 * D), const2),                      # fused QKV bias (f32)
        pl.BlockSpec((1, 1, Dh), lambda b, h: (h, 0, 0)),     # u bias (per head, pre-scaled)
        pl.BlockSpec((1, 1, Dh), lambda b, h: (h, 0, 0)),     # v bias (per head, pre-scaled)
        pl.BlockSpec((1, 1, T), lambda b, h: (b, 0, 0)),      # additive key-padding mask bias
        pl.BlockSpec((1, Dh, D), lambda b, h: (h, 0, 0)),     # Wo^T per-head slab (bf16)
        _const_spec((1, D), const2),                          # bo
    ]
    # x output block revisited across the head ("arbitrary") axis -> in-VMEM f32 accumulator
    out_specs = [pl.BlockSpec((1, T, D), lambda b, h: (b, 0, 0))]
    out_shape = [jax.ShapeDtypeStruct((B, T, D), f32)]
    if return_attn:
        out_specs.append(pl.BlockSpec((1, 1, T, T), lambda b, h: (b, h, 0, 0)))
        out_shape.append(jax.ShapeDtypeStruct((B, H, T, T), bf16))

    scratch = [pltpu.VMEM((H, T, Dh), bf16),       # q * 1/sqrt(D), head-major
               pltpu.VMEM((H, T, Dh), bf16),       # k
               pltpu.VMEM((H, T, Dh), bf16)]       # v

    cparams = pltpu.CompilerParams(
        dimension_semantics=("parallel", "arbitrary"),
        vmem_limit_bytes=_default_vmem_limit(),
    )

    outs = pl.pallas_call(
        partial(_fused_attn_kernel, num_heads=H, inv_sqrt_dim=inv_sqrt_dim,
                return_attn=return_attn),
        grid=(B, H),
        in_specs=in_specs,
        out_specs=out_specs,
        out_shape=out_shape,
        scratch_shapes=scratch,
        compiler_params=cparams,
    )(x, p_heads, gamma, beta, w_qkv, b_qkv, u_heads, v_heads, mask_bias, wo_heads, bo)

    if return_attn:
        x_out, attn = outs
        return {'x': x_out, 'attn': attn}
    return {'x': outs[0]}


# --------------------------- glue used only by the pure-JAX reference ---------------------------
def _relative_shift(pos_score):
    B, H, T1, T2 = pos_score.shape
    zeros = jnp.zeros((B, H, T1, 1), pos_score.dtype)
    padded = jnp.concatenate([zeros, pos_score], axis=-1)
    padded = padded.reshape(B, H, T2 + 1, T1)
    return padded[:, :, 1:].reshape(B, H, T1, T2)


# --------------------------- pure-JAX reference (mirrors the PyTorch forward) --------------
def attention_block_ref(x, valid_mask, pos_emb, params):
    B, T, D = x.shape
    H = params['num_heads']
    Dh = D // H
    res = x
    mu = jnp.mean(x, -1, keepdims=True)
    var = jnp.mean((x - mu) ** 2, -1, keepdims=True)
    xn = (x - mu) / jnp.sqrt(var + EPS) * params['ln_gamma'] + params['ln_beta']

    q = xn @ params['wq'].T + params['bq']
    k = xn @ params['wk'].T + params['bk']
    v = xn @ params['wv'].T + params['bv']
    pos = jnp.broadcast_to(pos_emb, (B, T, D)) @ params['wp'].T

    q4 = q.reshape(B, T, H, Dh)
    k4 = k.reshape(B, T, H, Dh).transpose(0, 2, 1, 3)
    v4 = v.reshape(B, T, H, Dh).transpose(0, 2, 1, 3)
    p4 = pos.reshape(B, T, H, Dh).transpose(0, 2, 1, 3)

    content = jnp.einsum('bhtd,bhsd->bhts',
                         (q4 + params['u_bias']).transpose(0, 2, 1, 3), k4)
    pos_score = jnp.einsum('bhtd,bhsd->bhts',
                           (q4 + params['v_bias']).transpose(0, 2, 1, 3), p4)
    pos_score = _relative_shift(pos_score)
    score = (content + pos_score) / math.sqrt(D)
    score = jnp.where((~valid_mask)[:, None, None, :], NEG_INF, score)
    attn_raw = jax.nn.softmax(score, axis=-1)
    ctx = jnp.einsum('bhts,bhsd->bhtd', attn_raw, v4).transpose(0, 2, 1, 3).reshape(B, T, D)
    out = ctx @ params['wo'].T + params['bo']
    return {'x': out + res, 'attn': attn_raw}


# --------------------------- deterministic parameter init ---------------------------
def init_params(key, d_model, num_heads):
    d_head = d_model // num_heads
    ks = jax.random.split(key, 12)
    s = 1.0 / math.sqrt(d_model)
    n = lambda k, shape, scale: (jax.random.normal(k, shape, jnp.float32) * scale)
    return dict(
        num_heads=num_heads,
        wq=n(ks[0], (d_model, d_model), s), bq=n(ks[1], (d_model,), 0.02),
        wk=n(ks[2], (d_model, d_model), s), bk=n(ks[3], (d_model,), 0.02),
        wv=n(ks[4], (d_model, d_model), s), bv=n(ks[5], (d_model,), 0.02),
        wp=n(ks[6], (d_model, d_model), s),
        wo=n(ks[7], (d_model, d_model), s), bo=n(ks[8], (d_model,), 0.02),
        u_bias=n(ks[9], (num_heads, d_head), 0.1),
        v_bias=n(ks[10], (num_heads, d_head), 0.1),
        ln_gamma=jnp.ones((d_model,), jnp.float32),
        ln_beta=jnp.zeros((d_model,), jnp.float32),
    )


if __name__ == "__main__":
    B, T, D, H = 2, 8, 32, 4
    key = jax.random.PRNGKey(0)
    k1, k2, k3 = jax.random.split(key, 3)

    x = jax.random.normal(k1, (B, T, D), jnp.float32)
    pos_emb = jax.random.normal(k2, (1, T, D), jnp.float32)
    lengths = jnp.array([6, 8], jnp.int32)
    valid_mask = jnp.arange(T)[None, :] < lengths[:, None]    # (B, T) bool, True = valid
    params = init_params(k3, D, H)

    out = attention_block_pallas(x, valid_mask, pos_emb, params, return_attn=True)
    jax.block_until_ready(out)

    ref = attention_block_ref(x, valid_mask, pos_emb, params)
    x_got = np.asarray(out['x'].astype(jnp.float32))
    a_got = np.asarray(out['attn'].astype(jnp.float32))
    assert np.allclose(x_got, np.asarray(ref['x']), atol=5e-2, rtol=5e-2)
    assert np.allclose(a_got, np.asarray(ref['attn']), atol=5e-2, rtol=5e-2)

    print("KERNEL_OK")
</pallas_src>

<mosaic_0001>
module attributes {stable_mosaic.version = 11 : i64} {
  func.func @_pos_proj_kernel(%arg0: memref<8x32xf32, #tpu.memory_space<vmem>>, %arg1: memref<32x32xbf16, #tpu.memory_space<vmem>>, %arg2: memref<8x32xbf16, #tpu.memory_space<vmem>>) attributes {dimension_semantics = [], scalar_prefetch = 0 : i64, scratch_operands = 0 : i64, tpu.core_type = #tpu.core_type<tc>} {
    %c0 = arith.constant 0 : index
    %c0_0 = arith.constant 0 : index
    %0 = vector.load %arg0[%c0, %c0_0] : memref<8x32xf32, #tpu.memory_space<vmem>>, vector<8x32xf32>
    %1 = arith.truncf %0 : vector<8x32xf32> to vector<8x32xbf16>
    %c0_1 = arith.constant 0 : index
    %c0_2 = arith.constant 0 : index
    %2 = vector.load %arg1[%c0_1, %c0_2] : memref<32x32xbf16, #tpu.memory_space<vmem>>, vector<32x32xbf16>
    %cst = arith.constant dense<0.000000e+00> : vector<8x32xf32>
    %3 = tpu.matmul %1, %2, %cst {dimension_numbers = #tpu.dot_dimension_numbers<[1], [0], [0], [1], [0, 0, 1, 1], [], []>} : vector<8x32xbf16>, vector<32x32xbf16>, vector<8x32xf32> -> vector<8x32xf32>
    %4 = arith.truncf %3 : vector<8x32xf32> to vector<8x32xbf16>
    %c0_3 = arith.constant 0 : index
    %c0_4 = arith.constant 0 : index
    %5 = vector.load %arg2[%c0_3, %c0_4] : memref<8x32xbf16, #tpu.memory_space<vmem>>, vector<8x32xbf16>
    tpu.vector_store %arg2[%c0_3, %c0_4], %4 {strides = array<i32>} : memref<8x32xbf16, #tpu.memory_space<vmem>>, vector<8x32xbf16>,
    return
  }
}

</mosaic_0001>

<llo_original>
// kernel: tpu_custom_call.1
$region0: #{tpu_custom_call.1}
  #allocation0 [shape = 'u32[]', space=smem, size = 0x4, offset = 0x4, fixed_abs, tag = 'smem constant byte address 0x4 - core index']
  #allocation1 [shape = 'u32[72,128]{1,0:T(1,128)}', space=vmem, size = 0x9000, scoped, tag = 'internal scratch']
  %s0 = inlined_call_operand.hbm [shape: f32[8,32], index: 0, kind: input, shape index: {}]
  %s1 = inlined_call_operand.hbm [shape: bf16[32,32], index: 1, kind: input, shape index: {}]
  %s2 = inlined_call_operand.hbm [shape: bf16[8,32], index: 2, kind: output, shape index: {}]
  %s3 = sld [smem:[#allocation0]]
  $region26: #{tpu_custom_call.1} parent=0
    _
  %s5 = ssub.s32 1, %s3
  %s6 = scalar_select 0, %s5, %s3
  $region1: #{tpu_custom_call.1} parent=0
    #allocation2 [shape = 'u8[4096]{0}', space=vmem, size = 0x1000, scoped, tag = 'input window, operand 0, single buffered']
    #allocation3 [shape = 's32[1]{0}', space=sflag, size = 0x4, scoped, tag = 'scoped memory for tpu_custom_call.1']
    #allocation4 [shape = 's32[1]{0}', space=sflag, size = 0x4, scoped, tag = 'scoped memory for tpu_custom_call.1']
    #allocation5 [shape = 'u8[8192]{0}', space=vmem, size = 0x2000, scoped, tag = 'input window, operand 1, single buffered']
    #allocation6 [shape = 's32[1]{0}', space=sflag, size = 0x4, scoped, tag = 'scoped memory for tpu_custom_call.1']
    #allocation7 [shape = 'u8[2048]{0}', space=vmem, size = 0x800, scoped, tag = 'output window, operand 0, single buffered']
    %7 = vsyncpa [#allocation3], 0
    %8 = vsyncpa [#allocation6], 0
    %9 = vsyncpa [#allocation4], 0
    // Predicated region
    $region2: #{tpu_custom_call.1} parent=1 // pred_check
      _
    $region3: #{tpu_custom_call.1} parent=1 // pred_check_branch
      %11 = sbr.rel (0) target = $region5
    $region4: #{tpu_custom_call.1} parent=1 // pred_region
      %13 = vsyncadd [#allocation3], 0
      %s15 = sshll.u32 %s0, 4
      %s16 = int_to_ptr.hbm [resolvable:$true] %s15
      %s17 = sshll.u32 [#allocation2], 4
      %s18 = int_to_ptr.vmem [resolvable:$true] %s17
      %20 = dma.hbm_to_vmem [thread:$0]  %s16, 128, %s18, [#allocation3]
    $region5: #{tpu_custom_call.1} parent=1 // pred_fallthru
      _
    // Predicated region
    $region6: #{tpu_custom_call.1} parent=1 // pred_check
      _
    $region7: #{tpu_custom_call.1} parent=1 // pred_check_branch
      %22 = sbr.rel (0) target = $region9
    $region8: #{tpu_custom_call.1} parent=1 // pred_region
      %24 = vsyncadd [#allocation6], 0
      %s25 = sshll.u32 %s1, 4
      %s26 = int_to_ptr.hbm [resolvable:$true] %s25
      %s27 = sshll.u32 [#allocation5], 4
      %s28 = int_to_ptr.vmem [resolvable:$true] %s27
      %33 = dma.hbm_to_vmem [thread:$0]  %s26, 256, %s28, [#allocation6], 64, 64, 4
    $region9: #{tpu_custom_call.1} parent=1 // pred_fallthru
      _
    // Predicated region
    $region10: #{tpu_custom_call.1} parent=1 // pred_check
      _
    $region11: #{tpu_custom_call.1} parent=1 // pred_check_branch
      %35 = sbr.rel (0) target = $region13
    $region12: #{tpu_custom_call.1} parent=1 // pred_region
      %37 = dma.done [#allocation3], 128
    $region13: #{tpu_custom_call.1} parent=1 // pred_fallthru
      _
    // Predicated region
    $region14: #{tpu_custom_call.1} parent=1 // pred_check
      _
    $region15: #{tpu_custom_call.1} parent=1 // pred_check_branch
      %39 = sbr.rel (0) target = $region17
    $region16: #{tpu_custom_call.1} parent=1 // pred_region
      %41 = dma.done [#allocation6], 256
    $region17: #{tpu_custom_call.1} parent=1 // pred_fallthru
      _
    %v43 = vld [vmem:[#allocation2] sm:$0xff]
    %v44 = vpack.c.bf16 %v43, %v43
    %v45 = vld [vmem:[#allocation5] sm:$0xf]
    %v46 = vld [vmem:[#allocation5 + $0x4] sm:$0xf]
    %v47 = vld [vmem:[#allocation5 + $0x8] sm:$0xf]
    %v48 = vld [vmem:[#allocation5 + $0xc] sm:$0xf]
    %v53 = vunpack.c.l.b16 %v45
    %v54 = vunpack.c.l.b16 %v46
    %v55 = vunpack.c.l.b16 %v47
    %v56 = vunpack.c.l.b16 %v48
    %v57 = vpack.c.b16 %v54, %v53
    %v58 = vpack.c.b16 %v56, %v55
    %vm61 = vcmask 261120
    %v63 = vsel %vm61, %v44, 0
    %65 = vmatpush.bf16.msra.mxu0 0
    %66 = vmatpush.bf16.msra.mxu0 0
    %67 = vmatpush.bf16.msra.mxu0 0
    %68 = vmatpush.bf16.msra.mxu0 0
    %69 = vmatpush.bf16.msra.mxu0 0
    %70 = vmatpush.bf16.msra.mxu0 0
    %71 = vmatpush.bf16.msra.mxu0 %v58
    %72 = vmatpush.bf16.msra.mxu0 %v57
    %73 = vmatmul.bf16.gmra.mxu0 %v63
    %v74 = vpop.f32.mrf.mxu0
    %v75 = vadd.f32 0.0, %v74
    %v76 = vpop.f32.mrf.mxu0
    %77 = vdwg.mxu0
    %v78 = vpack.c.bf16 %v75, %v75
    %vm79 = vcmask 257024
    %80 = vst.msk [vmem:[#allocation7] sm:$0xf] %vm79, %v78
    // Predicated region
    $region18: #{tpu_custom_call.1} parent=1 // pred_check
      _
    $region19: #{tpu_custom_call.1} parent=1 // pred_check_branch
      %82 = sbr.rel (0) target = $region21
    $region20: #{tpu_custom_call.1} parent=1 // pred_region
      %84 = vsyncadd [#allocation4], 0
      %s86 = sshll.u32 [#allocation7], 4
      %s87 = int_to_ptr.vmem [resolvable:$true] %s86
      %s88 = sshll.u32 %s2, 4
      %s89 = int_to_ptr.hbm [resolvable:$true] %s88
      %91 = dma.vmem_to_hbm [thread:$0]  %s87, 64, %s89, [#allocation4]
    $region21: #{tpu_custom_call.1} parent=1 // pred_fallthru
      _
    // Predicated region
    $region22: #{tpu_custom_call.1} parent=1 // pred_check
      _
    $region23: #{tpu_custom_call.1} parent=1 // pred_check_branch
      %93 = sbr.rel (0) target = $region25
    $region24: #{tpu_custom_call.1} parent=1 // pred_region
      %95 = dma.done [#allocation4], 64
    $region25: #{tpu_custom_call.1} parent=1 // pred_fallthru
      _
    %96 = vsyncpa [#allocation3], 1
    %97 = vsyncpa [#allocation6], 1
    %98 = vsyncpa [#allocation4], 1

</llo_original>
